<compile_context>
chip_gen: v5e
topology: v5e:2x2
jax: 0.10.0
libtpu: 0.0.40
codegen_flags: <defaults>
</compile_context>

<pallas_src>
import functools

import jax
import jax.numpy as jnp
from jax.experimental import pallas as pl
from jax.experimental.pallas import tpu as pltpu


def _path_attention_kernel(z_ref, w1_ref, b1_ref, w2s_ref, out_ref, *, n_valid):
    # z_ref:   (TB, N, E)   TB batches resident in VMEM (bf16 or f32 storage)
    # w1_ref:  (E, H)       first Linear weight (same dtype as z)
    # b1_ref:  (1, H)       first Linear bias, float32
    # w2s_ref: (1, H)       second Linear weight with 1/temp folded in, float32
    # out_ref: (1, TB, E)
    tb, n, e = z_ref.shape
    h_dim = w1_ref.shape[1]

    zb = z_ref[...]                                    # (TB, N, E)
    zm = zb.reshape(tb * n, e)                         # layout-trivial (N padded to pack)

    # Projection: ONE MXU matmul over all TB*N rows, f32 accumulation, VPU tanh.
    h = jnp.tanh(
        jnp.dot(zm, w1_ref[...], preferred_element_type=jnp.float32)
        + b1_ref[...]
    )                                                  # (TB*N, H) f32
    hb = h.reshape(tb, n, h_dim)                       # (TB, N, H)

    # Second Linear (H -> 1, no bias, scaled by 1/temp): broadcast-multiply +
    # lane reduction over H instead of a width-1 MXU matmul.
    if n % 128 == 0:
        # Lane-aligned N: lane-major softmax (N on lanes).
        s = jnp.sum(hb * w2s_ref[...], axis=-1)                        # (TB, N)
        if n_valid < n:
            col = jax.lax.broadcasted_iota(jnp.int32, (tb, n), 1)
            s = jnp.where(col < n_valid, s, -1e30)
        s = s - jnp.max(s, axis=-1, keepdims=True)
        p = jnp.exp(s)
        beta = (p / jnp.sum(p, axis=-1, keepdims=True))[:, :, None]    # (TB, N, 1)
    else:
        # Small N: keep scores on sublanes; beta lands directly in (TB, N, 1).
        s = jnp.sum(hb * w2s_ref[...], axis=-1, keepdims=True)         # (TB, N, 1)
        if n_valid < n:
            row = jax.lax.broadcasted_iota(jnp.int32, (tb, n, 1), 1)
            s = jnp.where(row < n_valid, s, -1e30)
        s = s - jnp.max(s, axis=1, keepdims=True)
        p = jnp.exp(s)
        beta = p / jnp.sum(p, axis=1, keepdims=True)                   # (TB, N, 1)

    # Weighted sum over N; the multiply with f32 beta promotes bf16 z in place
    # (no materialized full-tile f32 copy of zb).
    out = jnp.sum(beta * zb, axis=1)                   # (TB, E) f32
    out_ref[0] = out.astype(out_ref.dtype)


def _pick_block_b(b, n, e, z_itemsize, h_dim, *, target_rows=512,
                  min_z_block_bytes=1 << 20, vmem_budget=20 << 20):
    """Pick a divisor of b for the per-step batch block.

    Accounts for the full per-step working set (double-buffered z block, the
    f32 projection intermediate h, the f32 weighted-sum intermediate, the
    double-buffered output block and the resident weights), prefers an even
    number of grid steps >= 2 (v7x megacore balance), and targets >= 512 MXU
    rows and >= 1 MiB of z per step for DMA efficiency."""
    def footprint(tb):
        z_bytes = 2 * tb * n * e * z_itemsize           # double-buffered z block
        h_bytes = tb * n * h_dim * 4                    # f32 tanh/projection result
        ws_bytes = tb * n * e * 4                       # f32 weighted-sum product
        out_bytes = 2 * tb * e * 4                      # double-buffered output
        w_bytes = 2 * (e * h_dim * z_itemsize + 2 * h_dim * 4)
        return z_bytes + h_bytes + ws_bytes + out_bytes + w_bytes

    divisors = [d for d in range(1, b + 1) if b % d == 0]
    fitting = [d for d in divisors if footprint(d) <= vmem_budget] or [1]
    even_steps = [d for d in fitting if (b // d) >= 2 and (b // d) % 2 == 0]
    multi_steps = [d for d in fitting if (b // d) >= 2]
    cand = even_steps or multi_steps or fitting
    for d in cand:   # ascending: smallest block that feeds MXU and DMA well
        if d * n >= target_rows and d * n * e * z_itemsize >= min_z_block_bytes:
            return d
    return cand[-1]  # largest block that still fits the budget


def path_attention_pallas(z, w1, b1, w2, temp, *, block_b=None,
                          matmul_dtype=jnp.bfloat16):
    """PathAttention forward.

    z:  (B, M, L, E)
    w1: (E, H), b1: (H,)   first Linear (with bias)
    w2: (H,)               second Linear (no bias)
    temp: python float temperature
    matmul_dtype: storage/MXU dtype for z and W1 (default bf16: the kernel is
      HBM-bound on the z stream on every TPU generation, so halving z bytes is
      the dominant lever). Accumulation, softmax and the weighted sum stay f32.
      Pass jnp.float32 (or None) for exact float32 operands.
    Returns (B, E) in z.dtype.
    """
    B, M, L, E = z.shape
    N = M * L
    H = w1.shape[1]

    z2 = z.reshape(B, N, E)
    if matmul_dtype is not None:
        z2 = z2.astype(matmul_dtype)
        w1 = w1.astype(matmul_dtype)

    # Pad N to the sublane pack so the in-kernel reshapes are layout-trivial;
    # padded rows are masked out of the softmax (and are zero in z anyway).
    pack = 8 * (4 // max(1, z2.dtype.itemsize))
    N_pad = ((N + pack - 1) // pack) * pack
    if N_pad != N:
        z2 = jnp.pad(z2, ((0, 0), (0, N_pad - N), (0, 0)))

    b1_2d = b1.reshape(1, H).astype(jnp.float32)
    # Fold 1/temp into the second Linear's weights: (h @ w2) / temp == h @ (w2/temp).
    w2s = (w2.reshape(1, H) / temp).astype(jnp.float32)

    if block_b is None:
        block_b = _pick_block_b(B, N_pad, E, z2.dtype.itemsize, H)
    assert B % block_b == 0, "block_b must divide B"
    num_blocks = B // block_b
    # TODO(synk): for very large M*L*E a single batch may exceed the VMEM
    # budget; that case needs an additional grid axis tiling N.

    kernel = functools.partial(_path_attention_kernel, n_valid=N)

    cost = pl.CostEstimate(
        flops=2 * B * N_pad * E * H + 2 * B * N_pad * (H + E),
        transcendentals=B * N_pad * (H + 1),
        bytes_accessed=(z2.size * z2.dtype.itemsize
                        + num_blocks * (w1.size * w1.dtype.itemsize + 2 * H * 4)
                        + B * E * z.dtype.itemsize),
    )

    out = pl.pallas_call(
        kernel,
        out_shape=jax.ShapeDtypeStruct((num_blocks, block_b, E), z.dtype),
        grid_spec=pltpu.PrefetchScalarGridSpec(
            num_scalar_prefetch=0,
            grid=(num_blocks,),
            in_specs=[
                pl.BlockSpec((block_b, N_pad, E), lambda g: (g, 0, 0)),
                pl.BlockSpec((E, H), lambda g: (0, 0)),
                pl.BlockSpec((1, H), lambda g: (0, 0)),
                pl.BlockSpec((1, H), lambda g: (0, 0)),
            ],
            out_specs=pl.BlockSpec((1, block_b, E), lambda g: (g, 0, 0)),
        ),
        compiler_params=pltpu.CompilerParams(
            dimension_semantics=("parallel",),
            vmem_limit_bytes=48 << 20,
        ),
        cost_estimate=cost,
    )(z2, w1, b1_2d, w2s)
    return out.reshape(B, E)


def path_attention_ref(z, w1, b1, w2, temp, *, precision=jax.lax.Precision.HIGHEST):
    B, M, L, E = z.shape
    z2 = z.reshape(B, M * L, E)
    h = jnp.tanh(jnp.einsum("bne,eh->bnh", z2, w1, precision=precision) + b1)
    w = jnp.einsum("bnh,h->bn", h, w2, precision=precision)[..., None] / temp
    beta = jax.nn.softmax(w, axis=1)
    return jnp.sum(beta * z2, axis=1)


if __name__ == "__main__":
    # Small shapes consistent with the module: (B, num_metas, num_paths, E),
    # hidden_size=128. B=8 exercises a multi-step grid (block_b=4, 2 steps).
    B, M, L, E, H = 8, 4, 8, 32, 128
    temp = 0.2

    key = jax.random.PRNGKey(0)
    kz, kw1, kb1, kw2 = jax.random.split(key, 4)
    z = jax.random.normal(kz, (B, M, L, E), dtype=jnp.float32)
    w1 = jax.random.normal(kw1, (E, H), dtype=jnp.float32) * 0.1
    b1 = jax.random.normal(kb1, (H,), dtype=jnp.float32) * 0.1
    w2 = jax.random.normal(kw2, (H,), dtype=jnp.float32) * 0.1

    # Exact-semantics path: f32 operands, exact softmax division.
    ref = path_attention_ref(z, w1, b1, w2, temp)
    out_f32 = jax.block_until_ready(
        path_attention_pallas(z, w1, b1, w2, temp, matmul_dtype=jnp.float32))
    assert out_f32.shape == (B, E)
    err_f32 = float(jnp.max(jnp.abs(out_f32 - ref)))
    assert err_f32 < 2e-2, f"f32 max abs err {err_f32}"

    # Default fast path: bf16 z / W1 MXU operands (f32 accumulation / softmax /
    # weighted sum). Checked against the same math on bf16-quantized inputs so
    # the tolerance measures kernel correctness, not input quantization error.
    zq = z.astype(jnp.bfloat16).astype(jnp.float32)
    w1q = w1.astype(jnp.bfloat16).astype(jnp.float32)
    ref_q = path_attention_ref(zq, w1q, b1, w2, temp)
    out_bf16 = jax.block_until_ready(path_attention_pallas(z, w1, b1, w2, temp))
    assert out_bf16.shape == (B, E)
    err_bf16 = float(jnp.max(jnp.abs(out_bf16 - ref_q)))
    assert err_bf16 < 1e-2, f"bf16 max abs err {err_bf16}"

    print("KERNEL_OK")
</pallas_src>

<mosaic_0001>
module attributes {stable_mosaic.version = 11 : i64} {
  func.func @_path_attention_kernel(%arg0: i32, %arg1: memref<4x32x32xf32, #tpu.memory_space<vmem>>, %arg2: memref<32x128xf32, #tpu.memory_space<vmem>>, %arg3: memref<1x128xf32, #tpu.memory_space<vmem>>, %arg4: memref<1x128xf32, #tpu.memory_space<vmem>>, %arg5: memref<1x4x32xf32, #tpu.memory_space<vmem>>) attributes {dimension_semantics = [#tpu.dimension_semantics<parallel>], iteration_bounds = array<i64: 2>, scalar_prefetch = 0 : i64, scratch_operands = 0 : i64, tpu.core_type = #tpu.core_type<tc>, window_params = [{transform_indices = @transform_0, window_bounds = array<i64: 4, 32, 32>}, {pipeline_mode = #tpu.pipeline_mode<synchronous>, transform_indices = @transform_1, window_bounds = array<i64: 32, 128>}, {pipeline_mode = #tpu.pipeline_mode<synchronous>, transform_indices = @transform_2, window_bounds = array<i64: 1, 128>}, {pipeline_mode = #tpu.pipeline_mode<synchronous>, transform_indices = @transform_3, window_bounds = array<i64: 1, 128>}, {transform_indices = @transform_4, window_bounds = array<i64: 1, 4, 32>}]} {
    %c0 = arith.constant 0 : index
    %c0_0 = arith.constant 0 : index
    %c0_1 = arith.constant 0 : index
    %0 = vector.load %arg1[%c0, %c0_0, %c0_1] : memref<4x32x32xf32, #tpu.memory_space<vmem>>, vector<4x32x32xf32>
    %1 = vector.shape_cast %0 : vector<4x32x32xf32> to vector<128x32xf32>
    %c0_2 = arith.constant 0 : index
    %c0_3 = arith.constant 0 : index
    %2 = vector.load %arg2[%c0_2, %c0_3] : memref<32x128xf32, #tpu.memory_space<vmem>>, vector<32x128xf32>
    %cst = arith.constant dense<0.000000e+00> : vector<128x128xf32>
    %3 = tpu.matmul %1, %2, %cst {dimension_numbers = #tpu.dot_dimension_numbers<[1], [0], [0], [1], [0, 0, 1, 1], [], []>} : vector<128x32xf32>, vector<32x128xf32>, vector<128x128xf32> -> vector<128x128xf32>
    %c0_4 = arith.constant 0 : index
    %c0_5 = arith.constant 0 : index
    %4 = vector.load %arg3[%c0_4, %c0_5] : memref<1x128xf32, #tpu.memory_space<vmem>>, vector<1x128xf32>
    %5 = vector.broadcast %4 : vector<1x128xf32> to vector<128x128xf32>
    %6 = arith.addf %3, %5 : vector<128x128xf32>
    %7 = math.tanh %6 : vector<128x128xf32>
    %8 = vector.shape_cast %7 : vector<128x128xf32> to vector<4x32x128xf32>
    %c0_6 = arith.constant 0 : index
    %c0_7 = arith.constant 0 : index
    %9 = vector.load %arg4[%c0_6, %c0_7] : memref<1x128xf32, #tpu.memory_space<vmem>>, vector<1x128xf32>
    %10 = vector.shape_cast %9 : vector<1x128xf32> to vector<1x1x128xf32>
    %11 = vector.broadcast %10 : vector<1x1x128xf32> to vector<4x32x128xf32>
    %12 = arith.mulf %8, %11 : vector<4x32x128xf32>
    %cst_8 = arith.constant dense<0.000000e+00> : vector<4x32xf32>
    %13 = vector.multi_reduction <add>, %12, %cst_8 [2] : vector<4x32x128xf32> to vector<4x32xf32>
    %14 = vector.shape_cast %13 : vector<4x32xf32> to vector<4x32x1xf32>
    %cst_9 = arith.constant dense<0xFF800000> : vector<4x1xf32>
    %15 = vector.multi_reduction <maximumf>, %14, %cst_9 [1] : vector<4x32x1xf32> to vector<4x1xf32>
    %16 = vector.shape_cast %15 : vector<4x1xf32> to vector<4x1x1xf32>
    %17 = vector.broadcast %16 : vector<4x1x1xf32> to vector<4x32x1xf32>
    %18 = arith.subf %14, %17 : vector<4x32x1xf32>
    %19 = math.exp %18 : vector<4x32x1xf32>
    %cst_10 = arith.constant dense<0.000000e+00> : vector<4x1xf32>
    %20 = vector.multi_reduction <add>, %19, %cst_10 [1] : vector<4x32x1xf32> to vector<4x1xf32>
    %21 = vector.shape_cast %20 : vector<4x1xf32> to vector<4x1x1xf32>
    %22 = vector.broadcast %21 : vector<4x1x1xf32> to vector<4x32x1xf32>
    %23 = arith.divf %19, %22 : vector<4x32x1xf32>
    %24 = vector.broadcast %23 : vector<4x32x1xf32> to vector<4x32x32xf32>
    %25 = arith.mulf %24, %0 : vector<4x32x32xf32>
    %cst_11 = arith.constant dense<0.000000e+00> : vector<4x32xf32>
    %26 = vector.multi_reduction <add>, %25, %cst_11 [1] : vector<4x32x32xf32> to vector<4x32xf32>
    %c0_12 = arith.constant 0 : index
    %c0_13 = arith.constant 0 : index
    %c0_14 = arith.constant 0 : index
    %27 = vector.load %arg5[%c0_12, %c0_13, %c0_14] : memref<1x4x32xf32, #tpu.memory_space<vmem>>, vector<1x4x32xf32>
    %28 = vector.shape_cast %27 : vector<1x4x32xf32> to vector<4x32xf32>
    %29 = vector.shape_cast %26 : vector<4x32xf32> to vector<1x4x32xf32>
    tpu.vector_store %arg5[%c0_12, %c0_13, %c0_14], %29 {strides = array<i32>} : memref<1x4x32xf32, #tpu.memory_space<vmem>>, vector<1x4x32xf32>,
    return
  }
  func.func @transform_0(%arg0: i32) -> (i32, i32, i32) {
    %c0_i32 = arith.constant 0 : i32
    %c0_i32_0 = arith.constant 0 : i32
    %c0_i32_1 = arith.constant 0 : i32
    return %arg0, %c0_i32, %c0_i32_0 : i32, i32, i32
  }
  func.func @transform_1(%arg0: i32) -> (i32, i32) {
    %c0_i32 = arith.constant 0 : i32
    %c0_i32_0 = arith.constant 0 : i32
    %c0_i32_1 = arith.constant 0 : i32
    return %c0_i32, %c0_i32_0 : i32, i32
  }
  func.func @transform_2(%arg0: i32) -> (i32, i32) {
    %c0_i32 = arith.constant 0 : i32
    %c0_i32_0 = arith.constant 0 : i32
    %c0_i32_1 = arith.constant 0 : i32
    return %c0_i32, %c0_i32_0 : i32, i32
  }
  func.func @transform_3(%arg0: i32) -> (i32, i32) {
    %c0_i32 = arith.constant 0 : i32
    %c0_i32_0 = arith.constant 0 : i32
    %c0_i32_1 = arith.constant 0 : i32
    return %c0_i32, %c0_i32_0 : i32, i32
  }
  func.func @transform_4(%arg0: i32) -> (i32, i32, i32) {
    %c0_i32 = arith.constant 0 : i32
    %c0_i32_0 = arith.constant 0 : i32
    %c0_i32_1 = arith.constant 0 : i32
    return %arg0, %c0_i32, %c0_i32_0 : i32, i32, i32
  }
}

</mosaic_0001>

<llo_original>
// kernel: tpu_custom_call.1
$region0: #{tpu_custom_call.1}
  #allocation0 [shape = 'u32[]', space=smem, size = 0x4, offset = 0x4, fixed_abs, tag = 'smem constant byte address 0x4 - core index']
  #allocation1 [shape = 'u32[72,128]{1,0:T(1,128)}', space=vmem, size = 0x9000, scoped, tag = 'internal scratch']
  %s0 = inlined_call_operand.hbm [shape: f32[8,32,32], index: 0, kind: input, shape index: {}]
  %s1 = inlined_call_operand.hbm [shape: f32[32,128], index: 1, kind: input, shape index: {}]
  %s2 = inlined_call_operand.vmem [shape: f32[1,128], index: 2, kind: input, shape index: {}]
  %s3 = inlined_call_operand.vmem [shape: f32[1,128], index: 3, kind: input, shape index: {}]
  %s4 = inlined_call_operand.hbm [shape: f32[2,4,32], index: 4, kind: output, shape index: {}]
  %s5 = sld [smem:[#allocation0]]
  $region57: #{tpu_custom_call.1} parent=0
    _
  %s7 = ssub.s32 1, %s5
  %s8 = scalar_select 0, %s7, %s5
  $region1: #{tpu_custom_call.1} parent=0
    #allocation2 [shape = 'u8[131072]{0}', space=vmem, size = 0x20000, scoped, tag = 'input window, operand 0']
    #allocation3 [shape = 's32[2]{0}', space=sflag, size = 0x8, scoped, tag = 'scoped memory for tpu_custom_call.1']
    #allocation4 [shape = 's32[2]{0}', space=sflag, size = 0x8, scoped, tag = 'scoped memory for tpu_custom_call.1']
    #allocation5 [shape = 'u8[16384]{0}', space=vmem, size = 0x4000, scoped, tag = 'input window, operand 1, single buffered']
    #allocation6 [shape = 's32[1]{0}', space=sflag, size = 0x4, scoped, tag = 'scoped memory for tpu_custom_call.1']
    #allocation7 [shape = 'u8[4096]{0}', space=vmem, size = 0x1000, scoped, tag = 'output window, operand 0']
    %9 = vsyncpa [#allocation3], 0
    %s10 = scalar_lea.sflag [#allocation3], 1
    %11 = vsyncpa %s10, 0
    %12 = vsyncpa [#allocation6], 0
    %13 = vsyncpa [#allocation4], 0
    %s14 = scalar_lea.sflag [#allocation4], 1
    %15 = vsyncpa %s14, 0
    loop: start=0, step=1, limit=4
    $region2: #{tpu_custom_call.1} parent=1 // loop_pre_header
      _
    $region3: #{tpu_custom_call.1} parent=1 // loop_header
      %s17 = sphi 0, %s21
      %p18 = scmp.ge.s32.totalorder %s17, 4
      %s27 = sphi 0, %s29
      %s30 = sphi 0, %s27
      %s31 = sphi 0, %s30
      %s47 = sphi 0, %s31
      %s51 = sphi 0, %s51
      %s53 = sphi 0, %s51
      %s54 = sphi 0, %s53
      %s68 = sphi 0, %s54
      %s72 = sphi 0, %s72
      %s74 = sphi 0, %s72
      %s75 = sphi 0, %s74
      %s89 = sphi 0, %s75
      %s93 = sphi 0, %s93
      %s95 = sphi 0, %s93
      %s96 = sphi 0, %s95
      %s110 = sphi 0, %s96
      %s116 = sphi 0, %s118
      %s119 = sphi 0, %s116
      %s120 = sphi 0, %s119
      %s136 = sphi 0, %s120
    $region4: #{tpu_custom_call.1} parent=1 // loop_header_branch
      %20 = sbr.rel (%p18) target = $region8
    $region5: #{tpu_custom_call.1} parent=1 // loop_body
      %s22 = ssub.s32 %s17, 1
      %s23 = ssub.s32 %s17, 2
      %s24 = sadd.s32 %s17, 1
      %s25 = ssub.s32 %s17, %s24
      %p26 = scmp.eq.s32.totalorder %s25, 0
      %s28 = sadd.s32 %s27, 1
      %s29 = scalar_select %p26, %s27, %s28
      %p32 = pneg %p26
      %p33 = scmp.eq.s32.totalorder %s17, 1
      %p34 = por %p32, %p33
      %p35 = scmp.ne.s32.totalorder %s27, %s30
      %p36 = scmp.eq.s32.totalorder %s17, 0
      %p37 = por %p35, %p36
      %p38 = scmp.ne.s32.totalorder %s27, %s30
      %p39 = scmp.eq.s32.totalorder %s22, 1
      %p40 = por %p38, %p39
      %p41 = scmp.ne.s32.totalorder %s30, %s31
      %p42 = scmp.eq.s32.totalorder %s22, 0
      %p43 = por %p41, %p42
      %p44 = scmp.ne.s32.totalorder %s30, %s31
      %p45 = scmp.eq.s32.totalorder %s23, 1
      %p46 = por %p44, %p45
      %p48 = scmp.ne.s32.totalorder %s31, %s47
      %p49 = scmp.eq.s32.totalorder %s23, 0
      %p50 = por %p48, %p49
      %s52 = sadd.s32 %s51, 1
      %p55 = scmp.eq.s32.totalorder %s17, 1
      %p56 = scmp.ne.s32.totalorder %s51, %s53
      %p57 = scmp.eq.s32.totalorder %s17, 0
      %p58 = por %p56, %p57
      %p59 = scmp.ne.s32.totalorder %s51, %s53
      %p60 = scmp.eq.s32.totalorder %s22, 1
      %p61 = por %p59, %p60
      %p62 = scmp.ne.s32.totalorder %s53, %s54
      %p63 = scmp.eq.s32.totalorder %s22, 0
      %p64 = por %p62, %p63
      %p65 = scmp.ne.s32.totalorder %s53, %s54
      %p66 = scmp.eq.s32.totalorder %s23, 1
      %p67 = por %p65, %p66
      %p69 = scmp.ne.s32.totalorder %s54, %s68
      %p70 = scmp.eq.s32.totalorder %s23, 0
      %p71 = por %p69, %p70
      %s73 = sadd.s32 %s72, 1
      %p76 = scmp.eq.s32.totalorder %s17, 1
      %p77 = scmp.ne.s32.totalorder %s72, %s74
      %p78 = scmp.eq.s32.totalorder %s17, 0
      %p79 = por %p77, %p78
      %p80 = scmp.ne.s32.totalorder %s72, %s74
      %p81 = scmp.eq.s32.totalorder %s22, 1
      %p82 = por %p80, %p81
      %p83 = scmp.ne.s32.totalorder %s74, %s75
      %p84 = scmp.eq.s32.totalorder %s22, 0
      %p85 = por %p83, %p84
      %p86 = scmp.ne.s32.totalorder %s74, %s75
      %p87 = scmp.eq.s32.totalorder %s23, 1
      %p88 = por %p86, %p87
      %p90 = scmp.ne.s32.totalorder %s75, %s89
      %p91 = scmp.eq.s32.totalorder %s23, 0
      %p92 = por %p90, %p91
      %s94 = sadd.s32 %s93, 1
      %p97 = scmp.eq.s32.totalorder %s17, 1
      %p98 = scmp.ne.s32.totalorder %s93, %s95
      %p99 = scmp.eq.s32.totalorder %s17, 0
      %p100 = por %p98, %p99
      %p101 = scmp.ne.s32.totalorder %s93, %s95
      %p102 = scmp.eq.s32.totalorder %s22, 1
      %p103 = por %p101, %p102
      %p104 = scmp.ne.s32.totalorder %s95, %s96
      %p105 = scmp.eq.s32.totalorder %s22, 0
      %p106 = por %p104, %p105
      %p107 = scmp.ne.s32.totalorder %s95, %s96
      %p108 = scmp.eq.s32.totalorder %s23, 1
      %p109 = por %p107, %p108
      %p111 = scmp.ne.s32.totalorder %s96, %s110
      %p112 = scmp.eq.s32.totalorder %s23, 0
      %p113 = por %p111, %p112
      %s114 = ssub.s32 %s17, %s24
      %p115 = scmp.eq.s32.totalorder %s114, 0
      %s117 = sadd.s32 %s116, 1
      %s118 = scalar_select %p115, %s116, %s117
      %p121 = pneg %p115
      %p122 = scmp.eq.s32.totalorder %s17, 1
      %p123 = por %p121, %p122
      %p124 = scmp.ne.s32.totalorder %s116, %s119
      %p125 = scmp.eq.s32.totalorder %s17, 0
      %p126 = por %p124, %p125
      %p127 = scmp.ne.s32.totalorder %s116, %s119
      %p128 = scmp.eq.s32.totalorder %s22, 1
      %p129 = por %p127, %p128
      %p130 = scmp.ne.s32.totalorder %s119, %s120
      %p131 = scmp.eq.s32.totalorder %s22, 0
      %p132 = por %p130, %p131
      %p133 = scmp.ne.s32.totalorder %s119, %s120
      %p134 = scmp.eq.s32.totalorder %s23, 1
      %p135 = por %p133, %p134
      %p137 = scmp.ne.s32.totalorder %s120, %s136
      %p138 = scmp.eq.s32.totalorder %s23, 0
      %p139 = por %p137, %p138
      %p140 = scmp.le.s32.totalorder 1, %s17
      %p141 = scmp.lt.s32.totalorder %s17, 3
      %p142 = pnand %p140, %p141
      %p143 = pneg %p142
      // Predicated region
      $region9: #{tpu_custom_call.1} parent=5 // pred_check
        _
      $region10: #{tpu_custom_call.1} parent=5 // pred_check_branch
        %145 = sbr.rel (%p142) target = $region12
      $region11: #{tpu_custom_call.1} parent=5 // pred_region
        %s146 = ssub.s32 %s17, 1
        // Predicated region
        $region13: #{tpu_custom_call.1} parent=11 // pred_check
          %p147 = pneg %p64
        $region14: #{tpu_custom_call.1} parent=11 // pred_check_branch
          %149 = sbr.rel (%p147) target = $region16
        $region15: #{tpu_custom_call.1} parent=11 // pred_region
          %151 = vsyncadd [#allocation6], 0
          %s152 = sshll.u32 %s1, 4
          %s153 = int_to_ptr.hbm [resolvable:$true] %s152
          %s154 = sshll.u32 [#allocation5], 4
          %s155 = int_to_ptr.vmem [resolvable:$true] %s154
          %160 = dma.hbm_to_vmem [thread:$0]  %s153, 512, %s155, [#allocation6], 128, 128, 8
        $region16: #{tpu_custom_call.1} parent=11 // pred_fallthru
          _
        // Predicated region
        $region17: #{tpu_custom_call.1} parent=11 // pred_check
          %p161 = pneg %p85
        $region18: #{tpu_custom_call.1} parent=11 // pred_check_branch
          %163 = sbr.rel (%p161) target = $region20
        $region19: #{tpu_custom_call.1} parent=11 // pred_region
          _
        $region20: #{tpu_custom_call.1} parent=11 // pred_fallthru
          _
        // Predicated region
        $region21: #{tpu_custom_call.1} parent=11 // pred_check
          %p164 = pneg %p106
        $region22: #{tpu_custom_call.1} parent=11 // pred_check_branch
          %166 = sbr.rel (%p164) target = $region24
        $region23: #{tpu_custom_call.1} parent=11 // pred_region
          _
        $region24: #{tpu_custom_call.1} parent=11 // pred_fallthru
          _
      $region12: #{tpu_custom_call.1} parent=5 // pred_fallthru
        _
      %p167 = scmp.lt.s32.totalorder %s17, 2
      // Predicated region
      $region25: #{tpu_custom_call.1} parent=5 // pred_check
        %p168 = pneg %p167
      $region26: #{tpu_custom_call.1} parent=5 // pred_check_branch
        %170 = sbr.rel (%p168) target = $region28
      $region27: #{tpu_custom_call.1} parent=5 // pred_region
        // Predicated region
        $region29: #{tpu_custom_call.1} parent=27 // pred_check
          %p171 = pneg %p37
        $region30: #{tpu_custom_call.1} parent=27 // pred_check_branch
          %173 = sbr.rel (%p171) target = $region32
        $region31: #{tpu_custom_call.1} parent=27 // pred_region
          %s174 = sand.u32 %s27, 1
          %s175 = scalar_lea.sflag [#allocation3], %s174
          %s176 = sand.u32 %s27, 1
          %s177 = smul.addr %s176, 128
          %s178 = scalar_lea.vmem [#allocation2], %s177
          %s179 = smul.u32 4, %s17
          %181 = vsyncadd %s175, 0
          %s182 = smul.addr %s179, 4
          %s183 = smul.addr %s182, 8
          %s184 = scalar_lea.hbm %s0, %s183
          %s185 = sshll.u32 %s184, 4
          %s186 = int_to_ptr.hbm [resolvable:$true] %s185
          %s187 = sshll.u32 %s178, 4
          %s188 = int_to_ptr.vmem [resolvable:$true] %s187
          %193 = dma.hbm_to_vmem [thread:$0]  %s186, 2048, %s188, %s175, 128, 128, 8
        $region32: #{tpu_custom_call.1} parent=27 // pred_fallthru
          _
      $region28: #{tpu_custom_call.1} parent=5 // pred_fallthru
        _
      %p194 = scmp.le.s32.totalorder 1, %s17
      %p195 = scmp.lt.s32.totalorder %s17, 3
      %p196 = pnand %p194, %p195
      %p197 = pneg %p196
      // Predicated region
      $region33: #{tpu_custom_call.1} parent=5 // pred_check
        _
      $region34: #{tpu_custom_call.1} parent=5 // pred_check_branch
        %199 = sbr.rel (%p196) target = $region36
      $region35: #{tpu_custom_call.1} parent=5 // pred_region
        %s200 = ssub.s32 %s17, 1
        %s201 = sand.u32 %s30, 1
        %s202 = scalar_lea.sflag [#allocation3], %s201
        %s203 = sand.u32 %s30, 1
        %s204 = smul.addr %s203, 128
        %s205 = scalar_lea.vmem [#allocation2], %s204
        // Predicated region
        $region37: #{tpu_custom_call.1} parent=35 // pred_check
          %p206 = pneg %p43
        $region38: #{tpu_custom_call.1} parent=35 // pred_check_branch
          %208 = sbr.rel (%p206) target = $region40
        $region39: #{tpu_custom_call.1} parent=35 // pred_region
          %210 = dma.done %s202, 2048
        $region40: #{tpu_custom_call.1} parent=35 // pred_fallthru
          _
        // Predicated region
        $region41: #{tpu_custom_call.1} parent=35 // pred_check
          %p211 = pneg %p64
        $region42: #{tpu_custom_call.1} parent=35 // pred_check_branch
          %213 = sbr.rel (%p211) target = $region44
        $region43: #{tpu_custom_call.1} parent=35 // pred_region
          %215 = dma.done [#allocation6], 512
        $region44: #{tpu_custom_call.1} parent=35 // pred_fallthru
          _
        %s216 = sand.u32 %s30, 1
        %s217 = scalar_lea.sflag [#allocation3], %s216
        %s218 = sand.u32 %s30, 1
        %s219 = smul.addr %s218, 128
        %s220 = scalar_lea.vmem [#allocation2], %s219
        %p221 = pneg %p43
        %p222 = pneg %p40
        %p223 = pneg %p64
        %p224 = pneg %p61
        %p225 = pneg %p85
        %p226 = pneg %p82
        %p227 = pneg %p106
        %p228 = pneg %p103
        %p229 = pneg %p132
        %p230 = pneg %p129
        %s231 = sand.u32 %s119, 1
        %s232 = scalar_lea.sflag [#allocation4], %s231
        %s233 = sand.u32 %s119, 1
        %s234 = smul.addr %s233, 4
        %s235 = scalar_lea.vmem [#allocation7], %s234
        %s236 = smul.u32 4, %s22
        %v237 = vld [vmem:[%s205] sm:$0xff]
        %v238 = vld [vmem:[%s205 + $0x8] sm:$0xff]
        %v239 = vld [vmem:[%s205 + $0x10] sm:$0xff]
        %v240 = vld [vmem:[%s205 + $0x18] sm:$0xff]
        %v241 = vld [vmem:[%s205 + $0x20] sm:$0xff]
        %v242 = vld [vmem:[%s205 + $0x28] sm:$0xff]
        %v243 = vld [vmem:[%s205 + $0x30] sm:$0xff]
        %v244 = vld [vmem:[%s205 + $0x38] sm:$0xff]
        %v245 = vld [vmem:[%s205 + $0x40] sm:$0xff]
        %v246 = vld [vmem:[%s205 + $0x48] sm:$0xff]
        %v247 = vld [vmem:[%s205 + $0x50] sm:$0xff]
        %v248 = vld [vmem:[%s205 + $0x58] sm:$0xff]
        %v249 = vld [vmem:[%s205 + $0x60] sm:$0xff]
        %v250 = vld [vmem:[%s205 + $0x68] sm:$0xff]
        %v251 = vld [vmem:[%s205 + $0x70] sm:$0xff]
        %v252 = vld [vmem:[%s205 + $0x78] sm:$0xff]
        %v253 = vld [vmem:[#allocation5] sm:$0xff]
        %v254 = vld [vmem:[#allocation5 + $0x8] sm:$0xff]
        %v255 = vld [vmem:[#allocation5 + $0x10] sm:$0xff]
        %v256 = vld [vmem:[#allocation5 + $0x18] sm:$0xff]
        %v257 = vld [vmem:[%s2] sm:$0x1]
        %v259 = vperm.slane %v257, 0
        %vm261 = vcmask 261120
        %v263 = vsel %vm261, %v237, 0
        %v266 = vsel %vm261, %v238, 0
        %v269 = vsel %vm261, %v239, 0
        %v272 = vsel %vm261, %v240, 0
        %v275 = vsel %vm261, %v241, 0
        %v278 = vsel %vm261, %v242, 0
        %v281 = vsel %vm261, %v243, 0
        %v284 = vsel %vm261, %v244, 0
        %v287 = vsel %vm261, %v245, 0
        %v290 = vsel %vm261, %v246, 0
        %v293 = vsel %vm261, %v247, 0
        %v296 = vsel %vm261, %v248, 0
        %v299 = vsel %vm261, %v249, 0
        %v302 = vsel %vm261, %v250, 0
        %v305 = vsel %vm261, %v251, 0
        %v308 = vsel %vm261, %v252, 0
        %310 = vmatpush.msra.mxu0 0.0
        %311 = vmatpush.msra.mxu0 0.0
        %312 = vmatpush.msra.mxu0 0.0
        %313 = vmatpush.msra.mxu0 0.0
        %314 = vmatpush.msra.mxu0 0.0
        %315 = vmatpush.msra.mxu0 0.0
        %316 = vmatpush.msra.mxu0 0.0
        %317 = vmatpush.msra.mxu0 0.0
        %318 = vmatpush.msra.mxu0 0.0
        %319 = vmatpush.msra.mxu0 0.0
        %320 = vmatpush.msra.mxu0 0.0
        %321 = vmatpush.msra.mxu0 0.0
        %322 = vmatpush.msra.mxu0 %v256
        %323 = vmatpush.msra.mxu0 %v255
        %324 = vmatpush.msra.mxu0 %v254
        %325 = vmatpush.msra.mxu0 %v253
        %326 = vmatmul.f32.gmra.mxu0 %v263
        %v327 = vpop.f32.mrf.mxu0
        %v328 = vadd.f32 %v259, %v327
        %329 = vmatmul.f32.gmra.mxu0 %v266
        %v330 = vpop.f32.mrf.mxu0
        %v331 = vadd.f32 %v259, %v330
        %332 = vmatmul.f32.gmra.mxu0 %v269
        %v333 = vpop.f32.mrf.mxu0
        %v334 = vadd.f32 %v259, %v333
        %335 = vmatmul.f32.gmra.mxu0 %v272
        %v336 = vpop.f32.mrf.mxu0
        %v337 = vadd.f32 %v259, %v336
        %338 = vmatmul.f32.gmra.mxu0 %v275
        %v339 = vpop.f32.mrf.mxu0
        %v340 = vadd.f32 %v259, %v339
        %341 = vmatmul.f32.gmra.mxu0 %v278
        %v342 = vpop.f32.mrf.mxu0
        %v343 = vadd.f32 %v259, %v342
        %344 = vmatmul.f32.gmra.mxu0 %v281
        %v345 = vpop.f32.mrf.mxu0
        %v346 = vadd.f32 %v259, %v345
        %347 = vmatmul.f32.gmra.mxu0 %v284
        %v348 = vpop.f32.mrf.mxu0
        %v349 = vadd.f32 %v259, %v348
        %350 = vmatmul.f32.gmra.mxu0 %v287
        %v351 = vpop.f32.mrf.mxu0
        %v352 = vadd.f32 %v259, %v351
        %353 = vmatmul.f32.gmra.mxu0 %v290
        %v354 = vpop.f32.mrf.mxu0
        %v355 = vadd.f32 %v259, %v354
        %356 = vmatmul.f32.gmra.mxu0 %v293
        %v357 = vpop.f32.mrf.mxu0
        %v358 = vadd.f32 %v259, %v357
        %359 = vmatmul.f32.gmra.mxu0 %v296
        %v360 = vpop.f32.mrf.mxu0
        %v361 = vadd.f32 %v259, %v360
        %362 = vmatmul.f32.gmra.mxu0 %v299
        %v363 = vpop.f32.mrf.mxu0
        %v364 = vadd.f32 %v259, %v363
        %365 = vmatmul.f32.gmra.mxu0 %v302
        %v366 = vpop.f32.mrf.mxu0
        %v367 = vadd.f32 %v259, %v366
        %368 = vmatmul.f32.gmra.mxu0 %v305
        %v369 = vpop.f32.mrf.mxu0
        %v370 = vadd.f32 %v259, %v369
        %371 = vmatmul.f32.gmra.mxu0 %v308
        %v372 = vpop.f32.mrf.mxu0
        %v373 = vadd.f32 %v259, %v372
        %374 = vdwg.mxu0
        %v375 = vtanh.pop %v328
        %v376 = vtanh.pop %v331
        %v377 = vtanh.pop %v334
        %v378 = vtanh.pop %v337
        %v379 = vtanh.pop %v340
        %v380 = vtanh.pop %v343
        %v381 = vtanh.pop %v346
        %v382 = vtanh.pop %v349
        %v383 = vtanh.pop %v352
        %v384 = vtanh.pop %v355
        %v385 = vtanh.pop %v358
        %v386 = vtanh.pop %v361
        %v387 = vtanh.pop %v364
        %v388 = vtanh.pop %v367
        %v389 = vtanh.pop %v370
        %v390 = vtanh.pop %v373
        %v391 = vld [vmem:[%s3] sm:$0x1]
        %v393 = vperm.slane %v391, 0
        %v395 = vmul.f32 %v375, %v393
        %v396 = vmul.f32 %v376, %v393
        %v397 = vmul.f32 %v377, %v393
        %v398 = vmul.f32 %v378, %v393
        %v399 = vmul.f32 %v379, %v393
        %v400 = vmul.f32 %v380, %v393
        %v401 = vmul.f32 %v381, %v393
        %v402 = vmul.f32 %v382, %v393
        %v403 = vmul.f32 %v383, %v393
        %v404 = vmul.f32 %v384, %v393
        %v405 = vmul.f32 %v385, %v393
        %v406 = vmul.f32 %v386, %v393
        %v407 = vmul.f32 %v387, %v393
        %v408 = vmul.f32 %v388, %v393
        %v409 = vmul.f32 %v389, %v393
        %v410 = vmul.f32 %v390, %v393
        %411 = vadd.xlane.f32.xlu0 %v395
        %v412 = vpop.xlane.xlu0 %411
        %413 = vadd.xlane.f32.xlu0 %v396
        %v414 = vpop.xlane.xlu0 %413
        %415 = vadd.xlane.f32.xlu0 %v397
        %v416 = vpop.xlane.xlu0 %415
        %417 = vadd.xlane.f32.xlu0 %v398
        %v418 = vpop.xlane.xlu0 %417
        %419 = vadd.xlane.f32.xlu0 %v399
        %v420 = vpop.xlane.xlu0 %419
        %421 = vadd.xlane.f32.xlu0 %v400
        %v422 = vpop.xlane.xlu0 %421
        %423 = vadd.xlane.f32.xlu0 %v401
        %v424 = vpop.xlane.xlu0 %423
        %425 = vadd.xlane.f32.xlu0 %v402
        %v426 = vpop.xlane.xlu0 %425
        %427 = vadd.xlane.f32.xlu0 %v403
        %v428 = vpop.xlane.xlu0 %427
        %429 = vadd.xlane.f32.xlu0 %v404
        %v430 = vpop.xlane.xlu0 %429
        %431 = vadd.xlane.f32.xlu0 %v405
        %v432 = vpop.xlane.xlu0 %431
        %433 = vadd.xlane.f32.xlu0 %v406
        %v434 = vpop.xlane.xlu0 %433
        %435 = vadd.xlane.f32.xlu0 %v407
        %v436 = vpop.xlane.xlu0 %435
        %437 = vadd.xlane.f32.xlu0 %v408
        %v438 = vpop.xlane.xlu0 %437
        %439 = vadd.xlane.f32.xlu0 %v409
        %v440 = vpop.xlane.xlu0 %439
        %441 = vadd.xlane.f32.xlu0 %v410
        %v442 = vpop.xlane.xlu0 %441
        %v443 = vmax.f32 %v412, %v414
        %v444 = vmax.f32 %v443, %v416
        %v445 = vmax.f32 %v444, %v418
        %v446 = vrot.slane %v445, 4
        %v447 = vmax.f32 %v445, %v446
        %v448 = vrot.slane %v447, 2
        %v449 = vmax.f32 %v447, %v448
        %v450 = vrot.slane %v449, 1
        %v451 = vmax.f32 %v449, %v450
        %v452 = vmax.f32 %v420, %v422
        %v453 = vmax.f32 %v452, %v424
        %v454 = vmax.f32 %v453, %v426
        %v455 = vrot.slane %v454, 4
        %v456 = vmax.f32 %v454, %v455
        %v457 = vrot.slane %v456, 2
        %v458 = vmax.f32 %v456, %v457
        %v459 = vrot.slane %v458, 1
        %v460 = vmax.f32 %v458, %v459
        %v461 = vmax.f32 %v428, %v430
        %v462 = vmax.f32 %v461, %v432
        %v463 = vmax.f32 %v462, %v434
        %v464 = vrot.slane %v463, 4
        %v465 = vmax.f32 %v463, %v464
        %v466 = vrot.slane %v465, 2
        %v467 = vmax.f32 %v465, %v466
        %v468 = vrot.slane %v467, 1
        %v469 = vmax.f32 %v467, %v468
        %v470 = vmax.f32 %v436, %v438
        %v471 = vmax.f32 %v470, %v440
        %v472 = vmax.f32 %v471, %v442
        %v473 = vrot.slane %v472, 4
        %v474 = vmax.f32 %v472, %v473
        %v475 = vrot.slane %v474, 2
        %v476 = vmax.f32 %v474, %v475
        %v477 = vrot.slane %v476, 1
        %v478 = vmax.f32 %v476, %v477
        %v479 = vsub.f32 %v412, %v451
        %v480 = vsub.f32 %v414, %v451
        %v481 = vsub.f32 %v416, %v451
        %v482 = vsub.f32 %v418, %v451
        %v483 = vsub.f32 %v420, %v460
        %v484 = vsub.f32 %v422, %v460
        %v485 = vsub.f32 %v424, %v460
        %v486 = vsub.f32 %v426, %v460
        %v487 = vsub.f32 %v428, %v469
        %v488 = vsub.f32 %v430, %v469
        %v489 = vsub.f32 %v432, %v469
        %v490 = vsub.f32 %v434, %v469
        %v491 = vsub.f32 %v436, %v478
        %v492 = vsub.f32 %v438, %v478
        %v493 = vsub.f32 %v440, %v478
        %v494 = vsub.f32 %v442, %v478
        %v495 = vmul.f32 %v479, 1.442695
        %v496 = vpow.pop %v495
        %v497 = vmul.f32 %v480, 1.442695
        %v498 = vpow.pop %v497
        %v499 = vmul.f32 %v481, 1.442695
        %v500 = vpow.pop %v499
        %v501 = vmul.f32 %v482, 1.442695
        %v502 = vpow.pop %v501
        %v503 = vmul.f32 %v483, 1.442695
        %v504 = vpow.pop %v503
        %v505 = vmul.f32 %v484, 1.442695
        %v506 = vpow.pop %v505
        %v507 = vmul.f32 %v485, 1.442695
        %v508 = vpow.pop %v507
        %v509 = vmul.f32 %v486, 1.442695
        %v510 = vpow.pop %v509
        %v511 = vmul.f32 %v487, 1.442695
        %v512 = vpow.pop %v511
        %v513 = vmul.f32 %v488, 1.442695
        %v514 = vpow.pop %v513
        %v515 = vmul.f32 %v489, 1.442695
        %v516 = vpow.pop %v515
        %v517 = vmul.f32 %v490, 1.442695
        %v518 = vpow.pop %v517
        %v519 = vmul.f32 %v491, 1.442695
        %v520 = vpow.pop %v519
        %v521 = vmul.f32 %v492, 1.442695
        %v522 = vpow.pop %v521
        %v523 = vmul.f32 %v493, 1.442695
        %v524 = vpow.pop %v523
        %v525 = vmul.f32 %v494, 1.442695
        %v526 = vpow.pop %v525
        %v527 = vadd.f32 %v496, %v498
        %v528 = vadd.f32 %v527, %v500
        %v529 = vadd.f32 %v528, %v502
        %v530 = vrot.slane %v529, 4
        %v531 = vadd.f32 %v529, %v530
        %v532 = vrot.slane %v531, 2
        %v533 = vadd.f32 %v531, %v532
        %v534 = vrot.slane %v533, 1
        %v535 = vadd.f32 %v533, %v534
        %v536 = vadd.f32 %v504, %v506
        %v537 = vadd.f32 %v536, %v508
        %v538 = vadd.f32 %v537, %v510
        %v539 = vrot.slane %v538, 4
        %v540 = vadd.f32 %v538, %v539
        %v541 = vrot.slane %v540, 2
        %v542 = vadd.f32 %v540, %v541
        %v543 = vrot.slane %v542, 1
        %v544 = vadd.f32 %v542, %v543
        %v545 = vadd.f32 %v512, %v514
        %v546 = vadd.f32 %v545, %v516
        %v547 = vadd.f32 %v546, %v518
        %v548 = vrot.slane %v547, 4
        %v549 = vadd.f32 %v547, %v548
        %v550 = vrot.slane %v549, 2
        %v551 = vadd.f32 %v549, %v550
        %v552 = vrot.slane %v551, 1
        %v553 = vadd.f32 %v551, %v552
        %v554 = vadd.f32 %v520, %v522
        %v555 = vadd.f32 %v554, %v524
        %v556 = vadd.f32 %v555, %v526
        %v557 = vrot.slane %v556, 4
        %v558 = vadd.f32 %v556, %v557
        %v559 = vrot.slane %v558, 2
        %v560 = vadd.f32 %v558, %v559
        %v561 = vrot.slane %v560, 1
        %v562 = vadd.f32 %v560, %v561
        %v563 = vrcp.pop %v535
        %v564 = vmul.f32 %v535, %v563
        %v565 = vsub.f32 1.0, %v564
        %v566 = vmul.f32 %v563, %v565
        %v567 = vadd.f32 %v563, %v566
        %vm568 = vweird.f32 %v535
        %vm569 = vweird.f32 %v563
        %vm570 = vmor %vm568, %vm569
        %v571 = vsel %vm570, %v563, %v567
        %v572 = vand.u32 2147483647, %v535
        %vm573 = vcmp.eq.f32.partialorder %v572, 8.507059e+37
        %v574 = vand.u32 %v535, 2147483648
        %v575 = vor.u32 1.1754944e-38, %v574
        %v576 = vsel %vm573, %v575, %v571
        %v577 = vmul.f32 %v496, %v576
        %v578 = vmul.f32 %v498, %v576
        %v579 = vmul.f32 %v500, %v576
        %v580 = vmul.f32 %v502, %v576
        %v581 = vrcp.pop %v544
        %v582 = vmul.f32 %v544, %v581
        %v583 = vsub.f32 1.0, %v582
        %v584 = vmul.f32 %v581, %v583
        %v585 = vadd.f32 %v581, %v584
        %vm586 = vweird.f32 %v544
        %vm587 = vweird.f32 %v581
        %vm588 = vmor %vm586, %vm587
        %v589 = vsel %vm588, %v581, %v585
        %v590 = vand.u32 2147483647, %v544
        %vm591 = vcmp.eq.f32.partialorder %v590, 8.507059e+37
        %v592 = vand.u32 %v544, 2147483648
        %v593 = vor.u32 1.1754944e-38, %v592
        %v594 = vsel %vm591, %v593, %v589
        %v595 = vmul.f32 %v504, %v594
        %v596 = vmul.f32 %v506, %v594
        %v597 = vmul.f32 %v508, %v594
        %v598 = vmul.f32 %v510, %v594
        %v599 = vrcp.pop %v553
        %v600 = vmul.f32 %v553, %v599
        %v601 = vsub.f32 1.0, %v600
        %v602 = vmul.f32 %v599, %v601
        %v603 = vadd.f32 %v599, %v602
        %vm604 = vweird.f32 %v553
        %vm605 = vweird.f32 %v599
        %vm606 = vmor %vm604, %vm605
        %v607 = vsel %vm606, %v599, %v603
        %v608 = vand.u32 2147483647, %v553
        %vm609 = vcmp.eq.f32.partialorder %v608, 8.507059e+37
        %v610 = vand.u32 %v553, 2147483648
        %v611 = vor.u32 1.1754944e-38, %v610
        %v612 = vsel %vm609, %v611, %v607
        %v613 = vmul.f32 %v512, %v612
        %v614 = vmul.f32 %v514, %v612
        %v615 = vmul.f32 %v516, %v612
        %v616 = vmul.f32 %v518, %v612
        %v617 = vrcp.pop %v562
        %v618 = vmul.f32 %v562, %v617
        %v619 = vsub.f32 1.0, %v618
        %v620 = vmul.f32 %v617, %v619
        %v621 = vadd.f32 %v617, %v620
        %vm622 = vweird.f32 %v562
        %vm623 = vweird.f32 %v617
        %vm624 = vmor %vm622, %vm623
        %v625 = vsel %vm624, %v617, %v621
        %v626 = vand.u32 2147483647, %v562
        %vm627 = vcmp.eq.f32.partialorder %v626, 8.507059e+37
        %v628 = vand.u32 %v562, 2147483648
        %v629 = vor.u32 1.1754944e-38, %v628
        %v630 = vsel %vm627, %v629, %v625
        %v631 = vmul.f32 %v520, %v630
        %v632 = vmul.f32 %v522, %v630
        %v633 = vmul.f32 %v524, %v630
        %v634 = vmul.f32 %v526, %v630
        %v635 = vmul.f32 %v577, %v237
        %v636 = vmul.f32 %v578, %v238
        %v637 = vmul.f32 %v579, %v239
        %v638 = vmul.f32 %v580, %v240
        %v639 = vmul.f32 %v595, %v241
        %v640 = vmul.f32 %v596, %v242
        %v641 = vmul.f32 %v597, %v243
        %v642 = vmul.f32 %v598, %v244
        %v643 = vmul.f32 %v613, %v245
        %v644 = vmul.f32 %v614, %v246
        %v645 = vmul.f32 %v615, %v247
        %v646 = vmul.f32 %v616, %v248
        %v647 = vmul.f32 %v631, %v249
        %v648 = vmul.f32 %v632, %v250
        %v649 = vmul.f32 %v633, %v251
        %v650 = vmul.f32 %v634, %v252
        %v651 = vsel %vm261, %v635, 0.0
        %v652 = vsel %vm261, %v636, 0.0
        %v653 = vadd.f32 %v651, %v652
        %v654 = vsel %vm261, %v637, 0.0
        %v655 = vadd.f32 %v653, %v654
        %v656 = vsel %vm261, %v638, 0.0
        %v657 = vadd.f32 %v655, %v656
        %v658 = vrot.slane %v657, 4
        %v659 = vadd.f32 %v657, %v658
        %v660 = vrot.slane %v659, 2
        %v661 = vadd.f32 %v659, %v660
        %v662 = vrot.slane %v661, 1
        %v663 = vadd.f32 %v661, %v662
        %v664 = vsel %vm261, %v639, 0.0
        %v665 = vsel %vm261, %v640, 0.0
        %v666 = vadd.f32 %v664, %v665
        %v667 = vsel %vm261, %v641, 0.0
        %v668 = vadd.f32 %v666, %v667
        %v669 = vsel %vm261, %v642, 0.0
        %v670 = vadd.f32 %v668, %v669
        %v671 = vrot.slane %v670, 4
        %v672 = vadd.f32 %v670, %v671
        %v673 = vrot.slane %v672, 2
        %v674 = vadd.f32 %v672, %v673
        %v675 = vrot.slane %v674, 1
        %v676 = vadd.f32 %v674, %v675
        %v677 = vsel %vm261, %v643, 0.0
        %v678 = vsel %vm261, %v644, 0.0
        %v679 = vadd.f32 %v677, %v678
        %v680 = vsel %vm261, %v645, 0.0
        %v681 = vadd.f32 %v679, %v680
        %v682 = vsel %vm261, %v646, 0.0
        %v683 = vadd.f32 %v681, %v682
        %v684 = vrot.slane %v683, 4
        %v685 = vadd.f32 %v683, %v684
        %v686 = vrot.slane %v685, 2
        %v687 = vadd.f32 %v685, %v686
        %v688 = vrot.slane %v687, 1
        %v689 = vadd.f32 %v687, %v688
        %v690 = vsel %vm261, %v647, 0.0
        %v691 = vsel %vm261, %v648, 0.0
        %v692 = vadd.f32 %v690, %v691
        %v693 = vsel %vm261, %v649, 0.0
        %v694 = vadd.f32 %v692, %v693
        %v695 = vsel %vm261, %v650, 0.0
        %v696 = vadd.f32 %v694, %v695
        %v697 = vrot.slane %v696, 4
        %v698 = vadd.f32 %v696, %v697
        %v699 = vrot.slane %v698, 2
        %v700 = vadd.f32 %v698, %v699
        %v701 = vrot.slane %v700, 1
        %v702 = vadd.f32 %v700, %v701
        %vm707 = vcmask 1041409
        %v708 = vsel %vm707, %v676, %v663
        %vm709 = vcmask 1042434
        %v710 = vsel %vm709, %v689, %v708
        %vm711 = vcmask 1043459
        %v712 = vsel %vm711, %v702, %v710
        %vm714 = vcmask 257024
        %715 = vst.msk [vmem:[%s235] sm:$0xf] %vm714, %v712
        %s716 = sand.u32 %s119, 1
        %s717 = scalar_lea.sflag [#allocation4], %s716
        %s718 = sand.u32 %s119, 1
        %s719 = smul.addr %s718, 4
        %s720 = scalar_lea.vmem [#allocation7], %s719
        // Predicated region
        $region45: #{tpu_custom_call.1} parent=35 // pred_check
          %p721 = pneg %p129
        $region46: #{tpu_custom_call.1} parent=35 // pred_check_branch
          %723 = sbr.rel (%p721) target = $region48
        $region47: #{tpu_custom_call.1} parent=35 // pred_region
          %725 = vsyncadd %s717, 0
          %s726 = smul.addr %s22, 4
          %s727 = scalar_lea.hbm %s4, %s726
          %s729 = sshll.u32 %s720, 4
          %s730 = int_to_ptr.vmem [resolvable:$true] %s729
          %s731 = sshll.u32 %s727, 4
          %s732 = int_to_ptr.hbm [resolvable:$true] %s731
          %734 = dma.vmem_to_hbm [thread:$0]  %s730, 64, %s732, %s717
        $region48: #{tpu_custom_call.1} parent=35 // pred_fallthru
          _
      $region36: #{tpu_custom_call.1} parent=5 // pred_fallthru
        _
      %p735 = scmp.le.s32.totalorder 2, %s17
      // Predicated region
      $region49: #{tpu_custom_call.1} parent=5 // pred_check
        %p736 = pneg %p735
      $region50: #{tpu_custom_call.1} parent=5 // pred_check_branch
        %738 = sbr.rel (%p736) target = $region52
      $region51: #{tpu_custom_call.1} parent=5 // pred_region
        %s739 = ssub.s32 %s17, 2
        // Predicated region
        $region53: #{tpu_custom_call.1} parent=51 // pred_check
          %p740 = pneg %p135
        $region54: #{tpu_custom_call.1} parent=51 // pred_check_branch
          %742 = sbr.rel (%p740) target = $region56
        $region55: #{tpu_custom_call.1} parent=51 // pred_region
          %s743 = sand.u32 %s120, 1
          %s744 = scalar_lea.sflag [#allocation4], %s743
          %s745 = sand.u32 %s120, 1
          %s746 = smul.addr %s745, 4
          %s747 = scalar_lea.vmem [#allocation7], %s746
          %749 = dma.done %s744, 64
        $region56: #{tpu_custom_call.1} parent=51 // pred_fallthru
          _
      $region52: #{tpu_custom_call.1} parent=5 // pred_fallthru
        _
    $region6: #{tpu_custom_call.1} parent=1 // loop_footer
      %s21 = sadd.s32 1, %s17
    $region7: #{tpu_custom_call.1} parent=1 // loop_footer_branch
      %16 = sbr.rel target = $region3
    $region8: #{tpu_custom_call.1} parent=1 // loop_exit
      _
    %750 = vsyncpa [#allocation3], 1
    %s751 = scalar_lea.sflag [#allocation3], 1
    %752 = vsyncpa %s751, 1
    %753 = vsyncpa [#allocation6], 1
    %754 = vsyncpa [#allocation4], 1
    %s755 = scalar_lea.sflag [#allocation4], 1
    %756 = vsyncpa %s755, 1

</llo_original>
